<compile_context>
chip_gen: v7x
topology: tpu7x:2x2x1
jax: 0.10.0
libtpu: 0.0.40
codegen_flags: <defaults>
</compile_context>

<pallas_src>
import jax
import jax.numpy as jnp
from jax.experimental import pallas as pl
from jax.experimental.pallas import tpu as pltpu


def _round_up(x, m):
    return ((x + m - 1) // m) * m


def _pick_tile(num_channels, cap=256, min_steps=4):
    """Channel tile: largest multiple-of-8 divisor of the 8-rounded channel
    count that is <= cap and still yields >= min_steps grid steps (good
    software-pipeline overlap); falls back to the largest divisor <= cap."""
    c8 = _round_up(num_channels, 8)
    cap = min(cap, c8)
    best = None
    for t in range(8, cap + 1, 8):
        if c8 % t == 0 and c8 // t >= min_steps:
            best = t
    if best is not None:
        return best
    for t in range(cap, 7, -8):
        if c8 % t == 0:
            return t
    return 8


def _pick_batch_tile(batch, cap=16):
    """Batch tile for the 'parallel' grid axis (megacore on v7x).  Must be a
    multiple of 8 or the full batch (BlockSpec sublane rule); capped so the
    per-step VMEM working set stays well under v7x's 64 MiB."""
    if batch <= cap:
        return batch
    best = batch
    for t in range(8, cap + 1, 8):
        if batch % t == 0:
            best = t
    return best


# ----------------------------------------------------------------------------
# Fused forward kernel.
#   step ki == 0 : o  = b2 + relu((centroid @ w0^T + b0) @ w1^T + b1) @ w2_cent
#   every step   : o += sum_{n in tile} relu(feat[:,n,:] @ w1^T + b1) . w2[:,n,:]
# ----------------------------------------------------------------------------
def _fused_kernel(feat_ref, cent_ref, w0t_ref, b0_ref, w1t_ref, b1_ref,
                  w2c_ref, w2cent_ref, b2_ref, o_ref):
    ki = pl.program_id(1)  # channel-tile (reduction) axis

    @pl.when(ki == 0)
    def _init():
        # ln0 (no activation; drop0 is identity in eval).
        c0 = jnp.dot(cent_ref[...], w0t_ref[...],
                     preferred_element_type=jnp.float32) + b0_ref[...]
        # ln1 + ReLU on the centroid row (w1^T upcast: tiny, resident weight).
        hc = jnp.maximum(
            jnp.dot(c0, w1t_ref[...].astype(jnp.float32),
                    preferred_element_type=jnp.float32) + b1_ref[...], 0.0)
        # Centroid row's slice of ln2, plus the ln2 bias -> accumulator init.
        o_ref[...] = (jnp.dot(hc, w2cent_ref[...],
                              preferred_element_type=jnp.float32)
                      + b2_ref[...])

    # --- Feature-channel tile: ln1 + ReLU on the MXU (bf16 x bf16 -> f32). ---
    feat = feat_ref[...]                        # (bt, tn, S) bf16
    bt, tn, s = feat.shape
    x2 = feat.reshape(bt * tn, s)               # merge leading dims (tn % 8 == 0)
    h2 = jnp.maximum(
        jnp.dot(x2, w1t_ref[...], preferred_element_type=jnp.float32)
        + b1_ref[...], 0.0)                     # (bt*tn, H) f32
    h3 = h2.reshape(bt, tn, h2.shape[-1])       # (bt, tn, H)

    # --- This tile's slice of ln2: statically unroll the (small) class dim and
    # reduce the channel (sublane) axis BEFORE the lane (H) axis.  This avoids
    # the (B, C, tn, H) broadcast + lane-first reduction (XLU/spill bound).
    n_classes = w2c_ref.shape[0]
    cols = []
    for c in range(n_classes):                  # static unroll, C == 4
        w2_slice = w2c_ref[c].astype(jnp.float32)        # (tn, H); pad rows == 0
        pc = h3 * w2_slice[None, :, :]                   # (bt, tn, H)  VPU
        pc = jnp.sum(pc, axis=1)                         # channel axis first
        cols.append(jnp.sum(pc, axis=-1, keepdims=True))  # (bt, 1) lane reduce
    contrib = jnp.concatenate(cols, axis=-1)             # (bt, C)

    o_ref[...] = o_ref[...] + contrib


# ----------------------------------------------------------------------------
# One-time parameter preparation (outside the per-call path).
# Torch nn.Linear layout in, kernel layout out.
# ----------------------------------------------------------------------------
def prepare_params(params, *, input_size_1, tn=None, stream_dtype=jnp.bfloat16):
    C1 = input_size_1
    H = params["b1"].shape[0]
    C = params["b2"].shape[0]
    S = params["b0"].shape[0]
    if tn is None:
        tn = _pick_tile(C1)
    assert tn % 8 == 0
    Np = _round_up(C1, tn)

    w2 = params["w2"]                                   # (C, (C1+1)*H)
    w2_feat = w2[:, : C1 * H].reshape(C, C1, H)         # w2[c, n*H + h]
    if Np != C1:                                        # zero-pad -> exact (0 is exact in bf16)
        w2_feat = jnp.pad(w2_feat, ((0, 0), (0, Np - C1), (0, 0)))

    return {
        "tn": tn,
        "w0t": params["w0"].T.astype(jnp.float32),      # (E, S) resident
        "b0": params["b0"].reshape(1, S).astype(jnp.float32),
        "w1t": params["w1"].T.astype(stream_dtype),     # (S, H) resident, bf16
        "b1": params["b1"].reshape(1, H).astype(jnp.float32),
        "w2c": w2_feat.astype(stream_dtype),            # (C, Np, H) streamed, bf16
        "w2cent": w2[:, C1 * H:].reshape(C, H).T.astype(jnp.float32),  # (H, C)
        "b2": params["b2"].reshape(1, C).astype(jnp.float32),
    }


def doc_classifier_transfer_forward(features, centroid, kp):
    """features: (B, C1, S) frozen backbone output; centroid: (B, E).
    Returns logits (B, num_classes) in float32."""
    B, C1, S = features.shape
    E = centroid.shape[1]
    H = kp["b1"].shape[1]
    C = kp["b2"].shape[1]
    tn = kp["tn"]
    Np = kp["w2c"].shape[1]
    assert Np % tn == 0 and Np >= C1

    stream_dtype = kp["w2c"].dtype
    features = features.astype(stream_dtype)
    centroid = centroid.astype(jnp.float32)
    if Np != C1:  # zero-pad channels; zero rows of w2c keep this exact
        features = jnp.pad(features, ((0, 0), (0, Np - C1), (0, 0)))

    bt = _pick_batch_tile(B)
    assert B % bt == 0
    n_tiles = Np // tn
    grid = (B // bt, n_tiles)

    elt = jnp.dtype(stream_dtype).itemsize
    flops = 2 * B * (Np * S * H + Np * H * C + E * S + S * H + H * C)
    bytes_accessed = (elt * (B * Np * S + C * Np * H + S * H)
                      + 4 * (B * E + E * S + S + H + H * C + C + B * C))

    return pl.pallas_call(
        _fused_kernel,
        out_shape=jax.ShapeDtypeStruct((B, C), jnp.float32),
        grid=grid,
        in_specs=[
            pl.BlockSpec((bt, tn, S), lambda b, n: (b, n, 0)),   # features (streamed)
            pl.BlockSpec((bt, E), lambda b, n: (b, 0)),          # centroid (resident)
            pl.BlockSpec((E, S), lambda b, n: (0, 0)),           # w0^T     (resident)
            pl.BlockSpec((1, S), lambda b, n: (0, 0)),           # b0
            pl.BlockSpec((S, H), lambda b, n: (0, 0)),           # w1^T     (resident)
            pl.BlockSpec((1, H), lambda b, n: (0, 0)),           # b1
            pl.BlockSpec((C, tn, H), lambda b, n: (0, n, 0)),    # w2 slices (streamed)
            pl.BlockSpec((H, C), lambda b, n: (0, 0)),           # w2 centroid slice
            pl.BlockSpec((1, C), lambda b, n: (0, 0)),           # b2
        ],
        out_specs=pl.BlockSpec((bt, C), lambda b, n: (b, 0)),    # resident accumulator
        compiler_params=pltpu.CompilerParams(
            dimension_semantics=("parallel", "arbitrary"),
            vmem_limit_bytes=48 * 1024 * 1024),
        cost_estimate=pl.CostEstimate(
            flops=flops, transcendentals=0, bytes_accessed=bytes_accessed),
    )(features, centroid, kp["w0t"], kp["b0"], kp["w1t"], kp["b1"],
      kp["w2c"], kp["w2cent"], kp["b2"])


# ----------------------------------------------------------------------------
# Synthetic params (nn.Linear layout) and a pure-JAX reference.
# ----------------------------------------------------------------------------
def init_params(key, *, bert_emb_size, input_size_1, input_size_2, hidden_size,
                num_classes):
    ks = jax.random.split(key, 6)
    scale = 0.05
    flat_in = (input_size_1 + 1) * hidden_size
    return {
        "w0": scale * jax.random.normal(ks[0], (input_size_2, bert_emb_size), jnp.float32),
        "b0": scale * jax.random.normal(ks[1], (input_size_2,), jnp.float32),
        "w1": scale * jax.random.normal(ks[2], (hidden_size, input_size_2), jnp.float32),
        "b1": scale * jax.random.normal(ks[3], (hidden_size,), jnp.float32),
        "w2": scale * jax.random.normal(ks[4], (num_classes, flat_in), jnp.float32),
        "b2": scale * jax.random.normal(ks[5], (num_classes,), jnp.float32),
    }


def _reference_forward(features, centroid, params, stream_dtype=jnp.float32):
    """Pure-JAX reference of the module forward.  `stream_dtype` mirrors the
    kernel's quantization of the streamed tensors (features, w1, w2 feature
    part) so the comparison isolates kernel correctness from bf16 rounding."""
    hp = jax.lax.Precision.HIGHEST
    f32 = jnp.float32
    q = lambda a: a.astype(stream_dtype).astype(f32)
    C1 = features.shape[1]
    H = params["b1"].shape[0]

    c = jnp.dot(centroid, params["w0"].T, precision=hp) + params["b0"]   # (B, S)
    w1q = q(params["w1"])                                                # (H, S)
    h_feat = jnp.maximum(
        jnp.einsum("bns,hs->bnh", q(features), w1q, precision=hp)
        + params["b1"], 0.0)                                             # (B, C1, H)
    h_cent = jnp.maximum(
        jnp.dot(c, w1q.T, precision=hp) + params["b1"], 0.0)             # (B, H)

    w2 = params["w2"]
    w2_feat = q(w2[:, : C1 * H].reshape(-1, C1, H))                      # (C, C1, H)
    w2_cent = w2[:, C1 * H:]                                             # (C, H)
    return (jnp.einsum("bnh,cnh->bc", h_feat, w2_feat, precision=hp)
            + jnp.dot(h_cent, w2_cent.T, precision=hp) + params["b2"])


if __name__ == "__main__":
    # Small shapes structurally consistent with the module
    # (original: bert=768, C1=1408, S=81, H=152).
    B = 2
    bert_emb_size = 48
    input_size_1 = 30      # feature channels (exercises channel zero-padding)
    input_size_2 = 24      # flattened spatial H*W
    hidden_size = 16
    num_classes = 4

    key = jax.random.PRNGKey(0)
    k_feat, k_cent, k_par = jax.random.split(key, 3)

    # TODO(synk): frozen efficientnet_b2.features() backbone not translated;
    # the kernel consumes its (B, C, H*W) feature map directly.
    features = jax.random.normal(k_feat, (B, input_size_1, input_size_2), jnp.float32)
    centroid = jax.random.normal(k_cent, (B, bert_emb_size), jnp.float32)

    params = init_params(
        k_par,
        bert_emb_size=bert_emb_size,
        input_size_1=input_size_1,
        input_size_2=input_size_2,
        hidden_size=hidden_size,
        num_classes=num_classes,
    )
    # Default picker -> tn=8 here (4 reduction steps), streams in bf16.
    kparams = prepare_params(params, input_size_1=input_size_1)

    logits = doc_classifier_transfer_forward(features, centroid, kparams)
    logits = jax.block_until_ready(logits)

    ref = _reference_forward(features, centroid, params, stream_dtype=jnp.bfloat16)
    assert logits.shape == (B, num_classes)
    assert jnp.allclose(logits, ref, atol=2e-3, rtol=2e-3), "mismatch vs reference"

    print("KERNEL_OK")
</pallas_src>

<mosaic_0001>
module attributes {stable_mosaic.version = 11 : i64} {
  func.func @_fused_kernel(%arg0: i32, %arg1: i32, %arg2: memref<2x8x24xbf16, #tpu.memory_space<vmem>>, %arg3: memref<2x48xf32, #tpu.memory_space<vmem>>, %arg4: memref<48x24xf32, #tpu.memory_space<vmem>>, %arg5: memref<1x24xf32, #tpu.memory_space<vmem>>, %arg6: memref<24x16xbf16, #tpu.memory_space<vmem>>, %arg7: memref<1x16xf32, #tpu.memory_space<vmem>>, %arg8: memref<4x8x16xbf16, #tpu.memory_space<vmem>>, %arg9: memref<16x4xf32, #tpu.memory_space<vmem>>, %arg10: memref<1x4xf32, #tpu.memory_space<vmem>>, %arg11: memref<2x4xf32, #tpu.memory_space<vmem>>) attributes {dimension_semantics = [#tpu.dimension_semantics<parallel>, #tpu.dimension_semantics<arbitrary>], iteration_bounds = array<i64: 1, 4>, scalar_prefetch = 0 : i64, scratch_operands = 0 : i64, tpu.core_type = #tpu.core_type<tc>, window_params = [{transform_indices = @transform_0, window_bounds = array<i64: 2, 8, 24>}, {transform_indices = @transform_1, window_bounds = array<i64: 2, 48>}, {pipeline_mode = #tpu.pipeline_mode<synchronous>, transform_indices = @transform_2, window_bounds = array<i64: 48, 24>}, {pipeline_mode = #tpu.pipeline_mode<synchronous>, transform_indices = @transform_3, window_bounds = array<i64: 1, 24>}, {pipeline_mode = #tpu.pipeline_mode<synchronous>, transform_indices = @transform_4, window_bounds = array<i64: 24, 16>}, {pipeline_mode = #tpu.pipeline_mode<synchronous>, transform_indices = @transform_5, window_bounds = array<i64: 1, 16>}, {transform_indices = @transform_6, window_bounds = array<i64: 4, 8, 16>}, {pipeline_mode = #tpu.pipeline_mode<synchronous>, transform_indices = @transform_7, window_bounds = array<i64: 16, 4>}, {pipeline_mode = #tpu.pipeline_mode<synchronous>, transform_indices = @transform_8, window_bounds = array<i64: 1, 4>}, {transform_indices = @transform_9, window_bounds = array<i64: 2, 4>}]} {
    %c0_i32 = arith.constant 0 : i32
    %0 = arith.cmpi eq, %arg1, %c0_i32 : i32
    %1 = arith.extui %0 : i1 to i32
    %c0_i32_0 = arith.constant 0 : i32
    %2 = arith.cmpi ne, %1, %c0_i32_0 : i32
    scf.if %2 {
      %c0_29 = arith.constant 0 : index
      %c0_30 = arith.constant 0 : index
      %53 = vector.load %arg3[%c0_29, %c0_30] : memref<2x48xf32, #tpu.memory_space<vmem>>, vector<2x48xf32>
      %c0_31 = arith.constant 0 : index
      %c0_32 = arith.constant 0 : index
      %54 = vector.load %arg4[%c0_31, %c0_32] : memref<48x24xf32, #tpu.memory_space<vmem>>, vector<48x24xf32>
      %cst_33 = arith.constant dense<0.000000e+00> : vector<2x24xf32>
      %55 = tpu.matmul %53, %54, %cst_33 {dimension_numbers = #tpu.dot_dimension_numbers<[1], [0], [0], [1], [0, 0, 1, 1], [], []>} : vector<2x48xf32>, vector<48x24xf32>, vector<2x24xf32> -> vector<2x24xf32>
      %c0_34 = arith.constant 0 : index
      %c0_35 = arith.constant 0 : index
      %56 = vector.load %arg5[%c0_34, %c0_35] : memref<1x24xf32, #tpu.memory_space<vmem>>, vector<1x24xf32>
      %57 = vector.broadcast %56 : vector<1x24xf32> to vector<2x24xf32>
      %58 = arith.addf %55, %57 : vector<2x24xf32>
      %c0_36 = arith.constant 0 : index
      %c0_37 = arith.constant 0 : index
      %59 = vector.load %arg6[%c0_36, %c0_37] : memref<24x16xbf16, #tpu.memory_space<vmem>>, vector<24x16xbf16>
      %60 = arith.extf %59 : vector<24x16xbf16> to vector<24x16xf32>
      %cst_38 = arith.constant dense<0.000000e+00> : vector<2x16xf32>
      %61 = tpu.matmul %58, %60, %cst_38 {dimension_numbers = #tpu.dot_dimension_numbers<[1], [0], [0], [1], [0, 0, 1, 1], [], []>} : vector<2x24xf32>, vector<24x16xf32>, vector<2x16xf32> -> vector<2x16xf32>
      %c0_39 = arith.constant 0 : index
      %c0_40 = arith.constant 0 : index
      %62 = vector.load %arg7[%c0_39, %c0_40] : memref<1x16xf32, #tpu.memory_space<vmem>>, vector<1x16xf32>
      %63 = vector.broadcast %62 : vector<1x16xf32> to vector<2x16xf32>
      %64 = arith.addf %61, %63 : vector<2x16xf32>
      %cst_41 = arith.constant 0.000000e+00 : f32
      %65 = vector.broadcast %cst_41 : f32 to vector<2x16xf32>
      %66 = arith.maximumf %64, %65 : vector<2x16xf32>
      %c0_42 = arith.constant 0 : index
      %c0_43 = arith.constant 0 : index
      %67 = vector.load %arg9[%c0_42, %c0_43] : memref<16x4xf32, #tpu.memory_space<vmem>>, vector<16x4xf32>
      %cst_44 = arith.constant dense<0.000000e+00> : vector<2x4xf32>
      %68 = tpu.matmul %66, %67, %cst_44 {dimension_numbers = #tpu.dot_dimension_numbers<[1], [0], [0], [1], [0, 0, 1, 1], [], []>} : vector<2x16xf32>, vector<16x4xf32>, vector<2x4xf32> -> vector<2x4xf32>
      %c0_45 = arith.constant 0 : index
      %c0_46 = arith.constant 0 : index
      %69 = vector.load %arg10[%c0_45, %c0_46] : memref<1x4xf32, #tpu.memory_space<vmem>>, vector<1x4xf32>
      %70 = vector.broadcast %69 : vector<1x4xf32> to vector<2x4xf32>
      %71 = arith.addf %68, %70 : vector<2x4xf32>
      %c0_47 = arith.constant 0 : index
      %c0_48 = arith.constant 0 : index
      %72 = vector.load %arg11[%c0_47, %c0_48] : memref<2x4xf32, #tpu.memory_space<vmem>>, vector<2x4xf32>
      tpu.vector_store %arg11[%c0_47, %c0_48], %71 {strides = array<i32>} : memref<2x4xf32, #tpu.memory_space<vmem>>, vector<2x4xf32>,
    } else {
    }
    %c0 = arith.constant 0 : index
    %c0_1 = arith.constant 0 : index
    %c0_2 = arith.constant 0 : index
    %3 = vector.load %arg2[%c0, %c0_1, %c0_2] : memref<2x8x24xbf16, #tpu.memory_space<vmem>>, vector<2x8x24xbf16>
    %4 = vector.shape_cast %3 : vector<2x8x24xbf16> to vector<16x24xbf16>
    %c0_3 = arith.constant 0 : index
    %c0_4 = arith.constant 0 : index
    %5 = vector.load %arg6[%c0_3, %c0_4] : memref<24x16xbf16, #tpu.memory_space<vmem>>, vector<24x16xbf16>
    %cst = arith.constant dense<0.000000e+00> : vector<16x16xf32>
    %6 = tpu.matmul %4, %5, %cst {dimension_numbers = #tpu.dot_dimension_numbers<[1], [0], [0], [1], [0, 0, 1, 1], [], []>} : vector<16x24xbf16>, vector<24x16xbf16>, vector<16x16xf32> -> vector<16x16xf32>
    %c0_5 = arith.constant 0 : index
    %c0_6 = arith.constant 0 : index
    %7 = vector.load %arg7[%c0_5, %c0_6] : memref<1x16xf32, #tpu.memory_space<vmem>>, vector<1x16xf32>
    %8 = vector.broadcast %7 : vector<1x16xf32> to vector<16x16xf32>
    %9 = arith.addf %6, %8 : vector<16x16xf32>
    %cst_7 = arith.constant 0.000000e+00 : f32
    %10 = vector.broadcast %cst_7 : f32 to vector<16x16xf32>
    %11 = arith.maximumf %9, %10 : vector<16x16xf32>
    %12 = vector.shape_cast %11 : vector<16x16xf32> to vector<2x8x16xf32>
    %c0_8 = arith.constant 0 : index
    %c0_9 = arith.constant 0 : index
    %c0_10 = arith.constant 0 : index
    %13 = vector.load %arg8[%c0_8, %c0_9, %c0_10] : memref<4x8x16xbf16, #tpu.memory_space<vmem>>, vector<1x8x16xbf16>
    %14 = vector.shape_cast %13 : vector<1x8x16xbf16> to vector<8x16xbf16>
    %15 = arith.extf %14 : vector<8x16xbf16> to vector<8x16xf32>
    %16 = vector.shape_cast %15 : vector<8x16xf32> to vector<1x8x16xf32>
    %17 = vector.broadcast %16 : vector<1x8x16xf32> to vector<2x8x16xf32>
    %18 = arith.mulf %12, %17 : vector<2x8x16xf32>
    %cst_11 = arith.constant dense<0.000000e+00> : vector<2x16xf32>
    %19 = vector.multi_reduction <add>, %18, %cst_11 [1] : vector<2x8x16xf32> to vector<2x16xf32>
    %cst_12 = arith.constant dense<0.000000e+00> : vector<2xf32>
    %20 = vector.multi_reduction <add>, %19, %cst_12 [1] : vector<2x16xf32> to vector<2xf32>
    %21 = vector.shape_cast %20 : vector<2xf32> to vector<2x1xf32>
    %c1 = arith.constant 1 : index
    %c0_13 = arith.constant 0 : index
    %c0_14 = arith.constant 0 : index
    %22 = vector.load %arg8[%c1, %c0_13, %c0_14] : memref<4x8x16xbf16, #tpu.memory_space<vmem>>, vector<1x8x16xbf16>
    %23 = vector.shape_cast %22 : vector<1x8x16xbf16> to vector<8x16xbf16>
    %24 = arith.extf %23 : vector<8x16xbf16> to vector<8x16xf32>
    %25 = vector.shape_cast %24 : vector<8x16xf32> to vector<1x8x16xf32>
    %26 = vector.broadcast %25 : vector<1x8x16xf32> to vector<2x8x16xf32>
    %27 = arith.mulf %12, %26 : vector<2x8x16xf32>
    %cst_15 = arith.constant dense<0.000000e+00> : vector<2x16xf32>
    %28 = vector.multi_reduction <add>, %27, %cst_15 [1] : vector<2x8x16xf32> to vector<2x16xf32>
    %cst_16 = arith.constant dense<0.000000e+00> : vector<2xf32>
    %29 = vector.multi_reduction <add>, %28, %cst_16 [1] : vector<2x16xf32> to vector<2xf32>
    %30 = vector.shape_cast %29 : vector<2xf32> to vector<2x1xf32>
    %c2 = arith.constant 2 : index
    %c0_17 = arith.constant 0 : index
    %c0_18 = arith.constant 0 : index
    %31 = vector.load %arg8[%c2, %c0_17, %c0_18] : memref<4x8x16xbf16, #tpu.memory_space<vmem>>, vector<1x8x16xbf16>
    %32 = vector.shape_cast %31 : vector<1x8x16xbf16> to vector<8x16xbf16>
    %33 = arith.extf %32 : vector<8x16xbf16> to vector<8x16xf32>
    %34 = vector.shape_cast %33 : vector<8x16xf32> to vector<1x8x16xf32>
    %35 = vector.broadcast %34 : vector<1x8x16xf32> to vector<2x8x16xf32>
    %36 = arith.mulf %12, %35 : vector<2x8x16xf32>
    %cst_19 = arith.constant dense<0.000000e+00> : vector<2x16xf32>
    %37 = vector.multi_reduction <add>, %36, %cst_19 [1] : vector<2x8x16xf32> to vector<2x16xf32>
    %cst_20 = arith.constant dense<0.000000e+00> : vector<2xf32>
    %38 = vector.multi_reduction <add>, %37, %cst_20 [1] : vector<2x16xf32> to vector<2xf32>
    %39 = vector.shape_cast %38 : vector<2xf32> to vector<2x1xf32>
    %c3 = arith.constant 3 : index
    %c0_21 = arith.constant 0 : index
    %c0_22 = arith.constant 0 : index
    %40 = vector.load %arg8[%c3, %c0_21, %c0_22] : memref<4x8x16xbf16, #tpu.memory_space<vmem>>, vector<1x8x16xbf16>
    %41 = vector.shape_cast %40 : vector<1x8x16xbf16> to vector<8x16xbf16>
    %42 = arith.extf %41 : vector<8x16xbf16> to vector<8x16xf32>
    %43 = vector.shape_cast %42 : vector<8x16xf32> to vector<1x8x16xf32>
    %44 = vector.broadcast %43 : vector<1x8x16xf32> to vector<2x8x16xf32>
    %45 = arith.mulf %12, %44 : vector<2x8x16xf32>
    %cst_23 = arith.constant dense<0.000000e+00> : vector<2x16xf32>
    %46 = vector.multi_reduction <add>, %45, %cst_23 [1] : vector<2x8x16xf32> to vector<2x16xf32>
    %cst_24 = arith.constant dense<0.000000e+00> : vector<2xf32>
    %47 = vector.multi_reduction <add>, %46, %cst_24 [1] : vector<2x16xf32> to vector<2xf32>
    %48 = vector.shape_cast %47 : vector<2xf32> to vector<2x1xf32>
    %49 = tpu.concatenate %21, %30, %39, %48 in 1 : vector<2x1xf32>, vector<2x1xf32>, vector<2x1xf32>, vector<2x1xf32> -> vector<2x4xf32>
    %c0_25 = arith.constant 0 : index
    %c0_26 = arith.constant 0 : index
    %50 = vector.load %arg11[%c0_25, %c0_26] : memref<2x4xf32, #tpu.memory_space<vmem>>, vector<2x4xf32>
    %51 = arith.addf %50, %49 : vector<2x4xf32>
    %c0_27 = arith.constant 0 : index
    %c0_28 = arith.constant 0 : index
    %52 = vector.load %arg11[%c0_27, %c0_28] : memref<2x4xf32, #tpu.memory_space<vmem>>, vector<2x4xf32>
    tpu.vector_store %arg11[%c0_27, %c0_28], %51 {strides = array<i32>} : memref<2x4xf32, #tpu.memory_space<vmem>>, vector<2x4xf32>,
    return
  }
  func.func @transform_0(%arg0: i32, %arg1: i32) -> (i32, i32, i32) {
    %c0_i32 = arith.constant 0 : i32
    %c0_i32_0 = arith.constant 0 : i32
    return %arg0, %arg1, %c0_i32 : i32, i32, i32
  }
  func.func @transform_1(%arg0: i32, %arg1: i32) -> (i32, i32) {
    %c0_i32 = arith.constant 0 : i32
    %c0_i32_0 = arith.constant 0 : i32
    return %arg0, %c0_i32 : i32, i32
  }
  func.func @transform_2(%arg0: i32, %arg1: i32) -> (i32, i32) {
    %c0_i32 = arith.constant 0 : i32
    %c0_i32_0 = arith.constant 0 : i32
    %c0_i32_1 = arith.constant 0 : i32
    return %c0_i32, %c0_i32_0 : i32, i32
  }
  func.func @transform_3(%arg0: i32, %arg1: i32) -> (i32, i32) {
    %c0_i32 = arith.constant 0 : i32
    %c0_i32_0 = arith.constant 0 : i32
    %c0_i32_1 = arith.constant 0 : i32
    return %c0_i32, %c0_i32_0 : i32, i32
  }
  func.func @transform_4(%arg0: i32, %arg1: i32) -> (i32, i32) {
    %c0_i32 = arith.constant 0 : i32
    %c0_i32_0 = arith.constant 0 : i32
    %c0_i32_1 = arith.constant 0 : i32
    return %c0_i32, %c0_i32_0 : i32, i32
  }
  func.func @transform_5(%arg0: i32, %arg1: i32) -> (i32, i32) {
    %c0_i32 = arith.constant 0 : i32
    %c0_i32_0 = arith.constant 0 : i32
    %c0_i32_1 = arith.constant 0 : i32
    return %c0_i32, %c0_i32_0 : i32, i32
  }
  func.func @transform_6(%arg0: i32, %arg1: i32) -> (i32, i32, i32) {
    %c0_i32 = arith.constant 0 : i32
    %c0_i32_0 = arith.constant 0 : i32
    %c0_i32_1 = arith.constant 0 : i32
    return %c0_i32, %arg1, %c0_i32_0 : i32, i32, i32
  }
  func.func @transform_7(%arg0: i32, %arg1: i32) -> (i32, i32) {
    %c0_i32 = arith.constant 0 : i32
    %c0_i32_0 = arith.constant 0 : i32
    %c0_i32_1 = arith.constant 0 : i32
    return %c0_i32, %c0_i32_0 : i32, i32
  }
  func.func @transform_8(%arg0: i32, %arg1: i32) -> (i32, i32) {
    %c0_i32 = arith.constant 0 : i32
    %c0_i32_0 = arith.constant 0 : i32
    %c0_i32_1 = arith.constant 0 : i32
    return %c0_i32, %c0_i32_0 : i32, i32
  }
  func.func @transform_9(%arg0: i32, %arg1: i32) -> (i32, i32) {
    %c0_i32 = arith.constant 0 : i32
    %c0_i32_0 = arith.constant 0 : i32
    return %arg0, %c0_i32 : i32, i32
  }
}

</mosaic_0001>

<llo_original>
// kernel: tpu_custom_call.1
$region0: #{tpu_custom_call.1}
  #allocation0 [shape = 'u32[]', space=smem, size = 0x4, offset = 0x4, fixed_abs, tag = 'smem constant byte address 0x4 - core index']
  #allocation1 [shape = 'u32[144,128]{1,0:T(1,128)}', space=vmem, size = 0x12000, scoped, tag = 'internal scratch']
  %s0 = inlined_call_operand.vmem [shape: bf16[2,32,24], index: 0, kind: input, shape index: {}]
  %s1 = inlined_call_operand.vmem [shape: f32[2,48], index: 1, kind: input, shape index: {}]
  %s2 = inlined_call_operand.vmem [shape: f32[48,24], index: 2, kind: input, shape index: {}]
  %s3 = inlined_call_operand.vmem [shape: f32[1,24], index: 3, kind: input, shape index: {}]
  %s4 = inlined_call_operand.vmem [shape: bf16[24,16], index: 4, kind: input, shape index: {}]
  %s5 = inlined_call_operand.vmem [shape: f32[1,16], index: 5, kind: input, shape index: {}]
  %s6 = inlined_call_operand.vmem [shape: bf16[4,32,16], index: 6, kind: input, shape index: {}]
  %s7 = inlined_call_operand.vmem [shape: f32[16,4], index: 7, kind: input, shape index: {}]
  %s8 = inlined_call_operand.vmem [shape: f32[1,4], index: 8, kind: input, shape index: {}]
  %s9 = inlined_call_operand.hbm [shape: f32[2,4], index: 9, kind: output, shape index: {}]
  %s10 = sld [smem:[#allocation0]]
  $region155: #{tpu_custom_call.1} parent=0
    _
  %s12 = ssub.s32 1, %s10
  %s13 = scalar_select 0, %s12, %s10
  $region1: #{tpu_custom_call.1} parent=0
    #allocation2 [shape = 'u8[8192]{0}', space=vmem, size = 0x2000, scoped, tag = 'input window, operand 0']
    #allocation3 [shape = 'u8[16384]{0}', space=vmem, size = 0x4000, scoped, tag = 'input window, operand 6']
    #allocation4 [shape = 'u8[1024]{0}', space=vmem, size = 0x400, scoped, tag = 'output window, operand 0, single buffered']
    #allocation5 [shape = 's32[2]{0}', space=sflag, size = 0x8, scoped, tag = 'scoped memory for tpu_custom_call.1']
    %14 = vsyncpa [#allocation5], 0
    loop: start=0, step=1, limit=6
    $region2: #{tpu_custom_call.1} parent=1 // loop_pre_header
      _
    $region3: #{tpu_custom_call.1} parent=1 // loop_header
      %s16 = sphi 0, %s20
      %p17 = scmp.ge.s32.totalorder %s16, 6
      %s23 = sphi 0, %s35
      %s24 = sphi 0, %s31
      %s25 = sphi 0, %s23
      %s26 = sphi 0, %s24
      %s27 = sphi 0, %s25
      %s28 = sphi 0, %s26
      %s40 = sphi 0, %s42
      %s43 = sphi 0, %s40
      %s44 = sphi 0, %s43
      %s60 = sphi 0, %s44
      %s66 = sphi 0, %s68
      %s69 = sphi 0, %s66
      %s70 = sphi 0, %s69
      %s86 = sphi 0, %s70
      %s90 = sphi 0, %s90
      %s92 = sphi 0, %s90
      %s93 = sphi 0, %s92
      %s107 = sphi 0, %s93
      %s111 = sphi 0, %s111
      %s113 = sphi 0, %s111
      %s114 = sphi 0, %s113
      %s128 = sphi 0, %s114
      %s132 = sphi 0, %s132
      %s134 = sphi 0, %s132
      %s135 = sphi 0, %s134
      %s149 = sphi 0, %s135
      %s153 = sphi 0, %s153
      %s155 = sphi 0, %s153
      %s156 = sphi 0, %s155
      %s170 = sphi 0, %s156
      %s176 = sphi 0, %s178
      %s179 = sphi 0, %s176
      %s180 = sphi 0, %s179
      %s196 = sphi 0, %s180
      %s200 = sphi 0, %s200
      %s202 = sphi 0, %s200
      %s203 = sphi 0, %s202
      %s217 = sphi 0, %s203
      %s221 = sphi 0, %s221
      %s223 = sphi 0, %s221
      %s224 = sphi 0, %s223
      %s238 = sphi 0, %s224
      %s244 = sphi 0, %s246
      %s247 = sphi 0, %s244
      %s248 = sphi 0, %s247
      %s264 = sphi 0, %s248
    $region4: #{tpu_custom_call.1} parent=1 // loop_header_branch
      %19 = sbr.rel (%p17) target = $region8
    $region5: #{tpu_custom_call.1} parent=1 // loop_body
      %s21 = ssub.s32 %s16, 1
      %s22 = ssub.s32 %s16, 2
      %s29 = sadd.s32 1, %s24
      %p30 = scmp.ge.s32.totalorder %s29, 4
      %s31 = scalar_select %p30, 0, %s29
      %s32 = sadd.s32 1, %s23
      %s33 = scalar_select %p30, %s32, %s23
      %p34 = scmp.ge.s32.totalorder %s33, 1
      %s35 = scalar_select %p34, 0, %s33
      %s36 = ssub.s32 %s23, %s35
      %s37 = ssub.s32 %s24, %s31
      %s38 = sor.u32 %s36, %s37
      %p39 = scmp.eq.s32.totalorder %s38, 0
      %s41 = sadd.s32 %s40, 1
      %s42 = scalar_select %p39, %s40, %s41
      %p45 = pneg %p39
      %p46 = scmp.eq.s32.totalorder %s16, 3
      %p47 = por %p45, %p46
      %p48 = scmp.ne.s32.totalorder %s40, %s43
      %p49 = scmp.eq.s32.totalorder %s16, 0
      %p50 = por %p48, %p49
      %p51 = scmp.ne.s32.totalorder %s40, %s43
      %p52 = scmp.eq.s32.totalorder %s21, 3
      %p53 = por %p51, %p52
      %p54 = scmp.ne.s32.totalorder %s43, %s44
      %p55 = scmp.eq.s32.totalorder %s21, 0
      %p56 = por %p54, %p55
      %p57 = scmp.ne.s32.totalorder %s43, %s44
      %p58 = scmp.eq.s32.totalorder %s22, 3
      %p59 = por %p57, %p58
      %p61 = scmp.ne.s32.totalorder %s44, %s60
      %p62 = scmp.eq.s32.totalorder %s22, 0
      %p63 = por %p61, %p62
      %s64 = ssub.s32 %s23, %s35
      %p65 = scmp.eq.s32.totalorder %s64, 0
      %s67 = sadd.s32 %s66, 1
      %s68 = scalar_select %p65, %s66, %s67
      %p71 = pneg %p65
      %p72 = scmp.eq.s32.totalorder %s16, 3
      %p73 = por %p71, %p72
      %p74 = scmp.ne.s32.totalorder %s66, %s69
      %p75 = scmp.eq.s32.totalorder %s16, 0
      %p76 = por %p74, %p75
      %p77 = scmp.ne.s32.totalorder %s66, %s69
      %p78 = scmp.eq.s32.totalorder %s21, 3
      %p79 = por %p77, %p78
      %p80 = scmp.ne.s32.totalorder %s69, %s70
      %p81 = scmp.eq.s32.totalorder %s21, 0
      %p82 = por %p80, %p81
      %p83 = scmp.ne.s32.totalorder %s69, %s70
      %p84 = scmp.eq.s32.totalorder %s22, 3
      %p85 = por %p83, %p84
      %p87 = scmp.ne.s32.totalorder %s70, %s86
      %p88 = scmp.eq.s32.totalorder %s22, 0
      %p89 = por %p87, %p88
      %s91 = sadd.s32 %s90, 1
      %p94 = scmp.eq.s32.totalorder %s16, 3
      %p95 = scmp.ne.s32.totalorder %s90, %s92
      %p96 = scmp.eq.s32.totalorder %s16, 0
      %p97 = por %p95, %p96
      %p98 = scmp.ne.s32.totalorder %s90, %s92
      %p99 = scmp.eq.s32.totalorder %s21, 3
      %p100 = por %p98, %p99
      %p101 = scmp.ne.s32.totalorder %s92, %s93
      %p102 = scmp.eq.s32.totalorder %s21, 0
      %p103 = por %p101, %p102
      %p104 = scmp.ne.s32.totalorder %s92, %s93
      %p105 = scmp.eq.s32.totalorder %s22, 3
      %p106 = por %p104, %p105
      %p108 = scmp.ne.s32.totalorder %s93, %s107
      %p109 = scmp.eq.s32.totalorder %s22, 0
      %p110 = por %p108, %p109
      %s112 = sadd.s32 %s111, 1
      %p115 = scmp.eq.s32.totalorder %s16, 3
      %p116 = scmp.ne.s32.totalorder %s111, %s113
      %p117 = scmp.eq.s32.totalorder %s16, 0
      %p118 = por %p116, %p117
      %p119 = scmp.ne.s32.totalorder %s111, %s113
      %p120 = scmp.eq.s32.totalorder %s21, 3
      %p121 = por %p119, %p120
      %p122 = scmp.ne.s32.totalorder %s113, %s114
      %p123 = scmp.eq.s32.totalorder %s21, 0
      %p124 = por %p122, %p123
      %p125 = scmp.ne.s32.totalorder %s113, %s114
      %p126 = scmp.eq.s32.totalorder %s22, 3
      %p127 = por %p125, %p126
      %p129 = scmp.ne.s32.totalorder %s114, %s128
      %p130 = scmp.eq.s32.totalorder %s22, 0
      %p131 = por %p129, %p130
      %s133 = sadd.s32 %s132, 1
      %p136 = scmp.eq.s32.totalorder %s16, 3
      %p137 = scmp.ne.s32.totalorder %s132, %s134
      %p138 = scmp.eq.s32.totalorder %s16, 0
      %p139 = por %p137, %p138
      %p140 = scmp.ne.s32.totalorder %s132, %s134
      %p141 = scmp.eq.s32.totalorder %s21, 3
      %p142 = por %p140, %p141
      %p143 = scmp.ne.s32.totalorder %s134, %s135
      %p144 = scmp.eq.s32.totalorder %s21, 0
      %p145 = por %p143, %p144
      %p146 = scmp.ne.s32.totalorder %s134, %s135
      %p147 = scmp.eq.s32.totalorder %s22, 3
      %p148 = por %p146, %p147
      %p150 = scmp.ne.s32.totalorder %s135, %s149
      %p151 = scmp.eq.s32.totalorder %s22, 0
      %p152 = por %p150, %p151
      %s154 = sadd.s32 %s153, 1
      %p157 = scmp.eq.s32.totalorder %s16, 3
      %p158 = scmp.ne.s32.totalorder %s153, %s155
      %p159 = scmp.eq.s32.totalorder %s16, 0
      %p160 = por %p158, %p159
      %p161 = scmp.ne.s32.totalorder %s153, %s155
      %p162 = scmp.eq.s32.totalorder %s21, 3
      %p163 = por %p161, %p162
      %p164 = scmp.ne.s32.totalorder %s155, %s156
      %p165 = scmp.eq.s32.totalorder %s21, 0
      %p166 = por %p164, %p165
      %p167 = scmp.ne.s32.totalorder %s155, %s156
      %p168 = scmp.eq.s32.totalorder %s22, 3
      %p169 = por %p167, %p168
      %p171 = scmp.ne.s32.totalorder %s156, %s170
      %p172 = scmp.eq.s32.totalorder %s22, 0
      %p173 = por %p171, %p172
      %s174 = ssub.s32 %s24, %s31
      %p175 = scmp.eq.s32.totalorder %s174, 0
      %s177 = sadd.s32 %s176, 1
      %s178 = scalar_select %p175, %s176, %s177
      %p181 = pneg %p175
      %p182 = scmp.eq.s32.totalorder %s16, 3
      %p183 = por %p181, %p182
      %p184 = scmp.ne.s32.totalorder %s176, %s179
      %p185 = scmp.eq.s32.totalorder %s16, 0
      %p186 = por %p184, %p185
      %p187 = scmp.ne.s32.totalorder %s176, %s179
      %p188 = scmp.eq.s32.totalorder %s21, 3
      %p189 = por %p187, %p188
      %p190 = scmp.ne.s32.totalorder %s179, %s180
      %p191 = scmp.eq.s32.totalorder %s21, 0
      %p192 = por %p190, %p191
      %p193 = scmp.ne.s32.totalorder %s179, %s180
      %p194 = scmp.eq.s32.totalorder %s22, 3
      %p195 = por %p193, %p194
      %p197 = scmp.ne.s32.totalorder %s180, %s196
      %p198 = scmp.eq.s32.totalorder %s22, 0
      %p199 = por %p197, %p198
      %s201 = sadd.s32 %s200, 1
      %p204 = scmp.eq.s32.totalorder %s16, 3
      %p205 = scmp.ne.s32.totalorder %s200, %s202
      %p206 = scmp.eq.s32.totalorder %s16, 0
      %p207 = por %p205, %p206
      %p208 = scmp.ne.s32.totalorder %s200, %s202
      %p209 = scmp.eq.s32.totalorder %s21, 3
      %p210 = por %p208, %p209
      %p211 = scmp.ne.s32.totalorder %s202, %s203
      %p212 = scmp.eq.s32.totalorder %s21, 0
      %p213 = por %p211, %p212
      %p214 = scmp.ne.s32.totalorder %s202, %s203
      %p215 = scmp.eq.s32.totalorder %s22, 3
      %p216 = por %p214, %p215
      %p218 = scmp.ne.s32.totalorder %s203, %s217
      %p219 = scmp.eq.s32.totalorder %s22, 0
      %p220 = por %p218, %p219
      %s222 = sadd.s32 %s221, 1
      %p225 = scmp.eq.s32.totalorder %s16, 3
      %p226 = scmp.ne.s32.totalorder %s221, %s223
      %p227 = scmp.eq.s32.totalorder %s16, 0
      %p228 = por %p226, %p227
      %p229 = scmp.ne.s32.totalorder %s221, %s223
      %p230 = scmp.eq.s32.totalorder %s21, 3
      %p231 = por %p229, %p230
      %p232 = scmp.ne.s32.totalorder %s223, %s224
      %p233 = scmp.eq.s32.totalorder %s21, 0
      %p234 = por %p232, %p233
      %p235 = scmp.ne.s32.totalorder %s223, %s224
      %p236 = scmp.eq.s32.totalorder %s22, 3
      %p237 = por %p235, %p236
      %p239 = scmp.ne.s32.totalorder %s224, %s238
      %p240 = scmp.eq.s32.totalorder %s22, 0
      %p241 = por %p239, %p240
      %s242 = ssub.s32 %s23, %s35
      %p243 = scmp.eq.s32.totalorder %s242, 0
      %s245 = sadd.s32 %s244, 1
      %s246 = scalar_select %p243, %s244, %s245
      %p249 = pneg %p243
      %p250 = scmp.eq.s32.totalorder %s16, 3
      %p251 = por %p249, %p250
      %p252 = scmp.ne.s32.totalorder %s244, %s247
      %p253 = scmp.eq.s32.totalorder %s16, 0
      %p254 = por %p252, %p253
      %p255 = scmp.ne.s32.totalorder %s244, %s247
      %p256 = scmp.eq.s32.totalorder %s21, 3
      %p257 = por %p255, %p256
      %p258 = scmp.ne.s32.totalorder %s247, %s248
      %p259 = scmp.eq.s32.totalorder %s21, 0
      %p260 = por %p258, %p259
      %p261 = scmp.ne.s32.totalorder %s247, %s248
      %p262 = scmp.eq.s32.totalorder %s22, 3
      %p263 = por %p261, %p262
      %p265 = scmp.ne.s32.totalorder %s248, %s264
      %p266 = scmp.eq.s32.totalorder %s22, 0
      %p267 = por %p265, %p266
      %p268 = scmp.le.s32.totalorder 1, %s16
      %p269 = scmp.lt.s32.totalorder %s16, 5
      %p270 = pnand %p268, %p269
      %p271 = pneg %p270
      // Predicated region
      $region9: #{tpu_custom_call.1} parent=5 // pred_check
        _
      $region10: #{tpu_custom_call.1} parent=5 // pred_check_branch
        %273 = sbr.rel (%p270) target = $region12
      $region11: #{tpu_custom_call.1} parent=5 // pred_region
        %s274 = ssub.s32 %s16, 1
        // Predicated region
        $region13: #{tpu_custom_call.1} parent=11 // pred_check
          %p275 = pneg %p82
        $region14: #{tpu_custom_call.1} parent=11 // pred_check_branch
          %277 = sbr.rel (%p275) target = $region16
        $region15: #{tpu_custom_call.1} parent=11 // pred_region
          %p278 = scmp.lt.s32.totalorder %s25, 0
          %s279 = scalar_select %p278, %s25, 0
          %s280 = smul.addr %s279, 2
          %s281 = scalar_lea.vmem %s1, %s280
        $region16: #{tpu_custom_call.1} parent=11 // pred_fallthru
          _
        // Predicated region
        $region17: #{tpu_custom_call.1} parent=11 // pred_check
          %p282 = pneg %p103
        $region18: #{tpu_custom_call.1} parent=11 // pred_check_branch
          %284 = sbr.rel (%p282) target = $region20
        $region19: #{tpu_custom_call.1} parent=11 // pred_region
          _
        $region20: #{tpu_custom_call.1} parent=11 // pred_fallthru
          _
        // Predicated region
        $region21: #{tpu_custom_call.1} parent=11 // pred_check
          %p285 = pneg %p124
        $region22: #{tpu_custom_call.1} parent=11 // pred_check_branch
          %287 = sbr.rel (%p285) target = $region24
        $region23: #{tpu_custom_call.1} parent=11 // pred_region
          _
        $region24: #{tpu_custom_call.1} parent=11 // pred_fallthru
          _
        // Predicated region
        $region25: #{tpu_custom_call.1} parent=11 // pred_check
          %p288 = pneg %p145
        $region26: #{tpu_custom_call.1} parent=11 // pred_check_branch
          %290 = sbr.rel (%p288) target = $region28
        $region27: #{tpu_custom_call.1} parent=11 // pred_region
          _
        $region28: #{tpu_custom_call.1} parent=11 // pred_fallthru
          _
        // Predicated region
        $region29: #{tpu_custom_call.1} parent=11 // pred_check
          %p291 = pneg %p166
        $region30: #{tpu_custom_call.1} parent=11 // pred_check_branch
          %293 = sbr.rel (%p291) target = $region32
        $region31: #{tpu_custom_call.1} parent=11 // pred_region
          _
        $region32: #{tpu_custom_call.1} parent=11 // pred_fallthru
          _
        // Predicated region
        $region33: #{tpu_custom_call.1} parent=11 // pred_check
          %p294 = pneg %p213
        $region34: #{tpu_custom_call.1} parent=11 // pred_check_branch
          %296 = sbr.rel (%p294) target = $region36
        $region35: #{tpu_custom_call.1} parent=11 // pred_region
          _
        $region36: #{tpu_custom_call.1} parent=11 // pred_fallthru
          _
        // Predicated region
        $region37: #{tpu_custom_call.1} parent=11 // pred_check
          %p297 = pneg %p234
        $region38: #{tpu_custom_call.1} parent=11 // pred_check_branch
          %299 = sbr.rel (%p297) target = $region40
        $region39: #{tpu_custom_call.1} parent=11 // pred_region
          _
        $region40: #{tpu_custom_call.1} parent=11 // pred_fallthru
          _
      $region12: #{tpu_custom_call.1} parent=5 // pred_fallthru
        _
      %p300 = scmp.lt.s32.totalorder %s16, 4
      // Predicated region
      $region41: #{tpu_custom_call.1} parent=5 // pred_check
        %p301 = pneg %p300
      $region42: #{tpu_custom_call.1} parent=5 // pred_check_branch
        %303 = sbr.rel (%p301) target = $region44
      $region43: #{tpu_custom_call.1} parent=5 // pred_region
        // Predicated region
        $region45: #{tpu_custom_call.1} parent=43 // pred_check
          %p304 = pneg %p50
        $region46: #{tpu_custom_call.1} parent=43 // pred_check_branch
          %306 = sbr.rel (%p304) target = $region48
        $region47: #{tpu_custom_call.1} parent=43 // pred_region
          %s307 = sand.u32 %s40, 1
          %s308 = sand.u32 %s40, 1
          %s309 = smul.addr %s308, 8
          %s310 = scalar_lea.vmem [#allocation2], %s309
          %s311 = smul.u32 2, %s23
          %s312 = smul.addr %s311, 4
          %s313 = sadd.s32 %s24, %s312
          %s314 = smul.addr %s313, 4
          %s315 = scalar_lea.vmem %s0, %s314
          // Predicated region
          $region49: #{tpu_custom_call.1} parent=47 // pred_check
            _
          $region50: #{tpu_custom_call.1} parent=47 // pred_check_branch
            %317 = sbr.rel (0) target = $region52
          $region51: #{tpu_custom_call.1} parent=47 // pred_region
            // Predicated region
            $region53: #{tpu_custom_call.1} parent=51 // pred_check
              _
            $region54: #{tpu_custom_call.1} parent=51 // pred_check_branch
              %319 = sbr.rel target = $region56
            $region55: #{tpu_custom_call.1} parent=51 // pred_region
              // Predicated region
              $region68: #{tpu_custom_call.1} parent=55 // pred_check
                _
              $region69: #{tpu_custom_call.1} parent=55 // pred_check_branch
                %336 = sbr.rel (0) target = $region71
              $region70: #{tpu_custom_call.1} parent=55 // pred_region
                loop: start=0, step=1, limit=1
                $region72: #{tpu_custom_call.1} parent=70 // loop_pre_header
                  _
                $region73: #{tpu_custom_call.1} parent=70 // loop_header
                  %s338 = sphi 0, %s342
                  %p339 = scmp.ge.s32.totalorder %s338, 1
                  %s343 = sphi %s315, %s315
                  %s344 = sphi %s310, %s310
                $region74: #{tpu_custom_call.1} parent=70 // loop_header_branch
                  %341 = sbr.rel (%p339) target = $region78
                $region75: #{tpu_custom_call.1} parent=70 // loop_body
                  _
                $region76: #{tpu_custom_call.1} parent=70 // loop_footer
                  %s342 = sadd.s32 1, %s338
                $region77: #{tpu_custom_call.1} parent=70 // loop_footer_branch
                  %337 = sbr.rel target = $region73
                $region78: #{tpu_custom_call.1} parent=70 // loop_exit
                  _
                loop: start=0, step=1, limit=1
                $region79: #{tpu_custom_call.1} parent=70 // loop_pre_header
                  _
                $region80: #{tpu_custom_call.1} parent=70 // loop_header
                  %s347 = sphi 0, %s351
                  %p348 = scmp.ge.s32.totalorder %s347, 1
                  %s352 = sphi %s315, %s315
                  %s353 = sphi %s310, %s310
                $region81: #{tpu_custom_call.1} parent=70 // loop_header_branch
                  %350 = sbr.rel (%p348) target = $region85
                $region82: #{tpu_custom_call.1} parent=70 // loop_body
                  %v354 = vld [vmem:[%s352] sm:$0xf]
                  %355 = vst [vmem:[%s353] sm:$0xf] %v354
                  %v356 = vld [vmem:[%s352 + $0x10] sm:$0xf]
                  %357 = vst [vmem:[%s353 + $0x4] sm:$0xf] %v356
                $region83: #{tpu_custom_call.1} parent=70 // loop_footer
                  %s351 = sadd.s32 1, %s347
                $region84: #{tpu_custom_call.1} parent=70 // loop_footer_branch
                  %346 = sbr.rel target = $region80
                $region85: #{tpu_custom_call.1} parent=70 // loop_exit
                  _
              $region71: #{tpu_custom_call.1} parent=55 // pred_fallthru
                _
            $region56: #{tpu_custom_call.1} parent=51 // pred_fallthru
              _
            // Predicated region
            $region57: #{tpu_custom_call.1} parent=51 // pred_check
              _
            $region58: #{tpu_custom_call.1} parent=51 // pred_check_branch
              %321 = sbr.rel (0) target = $region60
            $region59: #{tpu_custom_call.1} parent=51 // pred_region
              loop: start=0, step=1, limit=1
              $region61: #{tpu_custom_call.1} parent=59 // loop_pre_header
                _
              $region62: #{tpu_custom_call.1} parent=59 // loop_header
                %s324 = sphi 0, %s328
                %p325 = scmp.ge.s32.totalorder %s324, 1
                %s329 = sphi %s315, %s315
                %s330 = sphi %s310, %s310
              $region63: #{tpu_custom_call.1} parent=59 // loop_header_branch
                %327 = sbr.rel (%p325) target = $region67
              $region64: #{tpu_custom_call.1} parent=59 // loop_body
                %v331 = vld [vmem:[%s329] sm:$0xf]
                %332 = vst [vmem:[%s330] sm:$0xf] %v331
                %v333 = vld [vmem:[%s329 + $0x10] sm:$0xf]
                %334 = vst [vmem:[%s330 + $0x4] sm:$0xf] %v333
              $region65: #{tpu_custom_call.1} parent=59 // loop_footer
                %s328 = sadd.s32 1, %s324
              $region66: #{tpu_custom_call.1} parent=59 // loop_footer_branch
                %323 = sbr.rel target = $region62
              $region67: #{tpu_custom_call.1} parent=59 // loop_exit
                _
            $region60: #{tpu_custom_call.1} parent=51 // pred_fallthru
              _
          $region52: #{tpu_custom_call.1} parent=47 // pred_fallthru
            _
          %358 = vnop
        $region48: #{tpu_custom_call.1} parent=43 // pred_fallthru
          _
        // Predicated region
        $region86: #{tpu_custom_call.1} parent=43 // pred_check
          %p359 = pneg %p186
        $region87: #{tpu_custom_call.1} parent=43 // pred_check_branch
          %361 = sbr.rel (%p359) target = $region89
        $region88: #{tpu_custom_call.1} parent=43 // pred_region
          %s362 = sand.u32 %s176, 1
          %s363 = sand.u32 %s176, 1
          %s364 = smul.addr %s363, 16
          %s365 = scalar_lea.vmem [#allocation3], %s364
          %s366 = smul.addr %s24, 4
          %s367 = scalar_lea.vmem %s6, %s366
          // Predicated region
          $region90: #{tpu_custom_call.1} parent=88 // pred_check
            _
          $region91: #{tpu_custom_call.1} parent=88 // pred_check_branch
            %369 = sbr.rel (0) target = $region93
          $region92: #{tpu_custom_call.1} parent=88 // pred_region
            // Predicated region
            $region94: #{tpu_custom_call.1} parent=92 // pred_check
              _
            $region95: #{tpu_custom_call.1} parent=92 // pred_check_branch
              %371 = sbr.rel target = $region97
            $region96: #{tpu_custom_call.1} parent=92 // pred_region
              // Predicated region
              $region109: #{tpu_custom_call.1} parent=96 // pred_check
                _
              $region110: #{tpu_custom_call.1} parent=96 // pred_check_branch
                %392 = sbr.rel (0) target = $region112
              $region111: #{tpu_custom_call.1} parent=96 // pred_region
                loop: start=0, step=1, limit=1
                $region113: #{tpu_custom_call.1} parent=111 // loop_pre_header
                  _
                $region114: #{tpu_custom_call.1} parent=111 // loop_header
                  %s394 = sphi 0, %s398
                  %p395 = scmp.ge.s32.totalorder %s394, 1
                  %s399 = sphi %s367, %s367
                  %s400 = sphi %s365, %s365
                $region115: #{tpu_custom_call.1} parent=111 // loop_header_branch
                  %397 = sbr.rel (%p395) target = $region119
                $region116: #{tpu_custom_call.1} parent=111 // loop_body
                  _
                $region117: #{tpu_custom_call.1} parent=111 // loop_footer
                  %s398 = sadd.s32 1, %s394
                $region118: #{tpu_custom_call.1} parent=111 // loop_footer_branch
                  %393 = sbr.rel target = $region114
                $region119: #{tpu_custom_call.1} parent=111 // loop_exit
                  _
                loop: start=0, step=1, limit=1
                $region120: #{tpu_custom_call.1} parent=111 // loop_pre_header
                  _
                $region121: #{tpu_custom_call.1} parent=111 // loop_header
                  %s403 = sphi 0, %s407
                  %p404 = scmp.ge.s32.totalorder %s403, 1
                  %s408 = sphi %s367, %s367
                  %s409 = sphi %s365, %s365
                $region122: #{tpu_custom_call.1} parent=111 // loop_header_branch
                  %406 = sbr.rel (%p404) target = $region126
                $region123: #{tpu_custom_call.1} parent=111 // loop_body
                  %v410 = vld [vmem:[%s408] sm:$0xf]
                  %411 = vst [vmem:[%s409] sm:$0xf] %v410
                  %v412 = vld [vmem:[%s408 + $0x10] sm:$0xf]
                  %413 = vst [vmem:[%s409 + $0x4] sm:$0xf] %v412
                  %v414 = vld [vmem:[%s408 + $0x20] sm:$0xf]
                  %415 = vst [vmem:[%s409 + $0x8] sm:$0xf] %v414
                  %v416 = vld [vmem:[%s408 + $0x30] sm:$0xf]
                  %417 = vst [vmem:[%s409 + $0xc] sm:$0xf] %v416
                $region124: #{tpu_custom_call.1} parent=111 // loop_footer
                  %s407 = sadd.s32 1, %s403
                $region125: #{tpu_custom_call.1} parent=111 // loop_footer_branch
                  %402 = sbr.rel target = $region121
                $region126: #{tpu_custom_call.1} parent=111 // loop_exit
                  _
              $region112: #{tpu_custom_call.1} parent=96 // pred_fallthru
                _
            $region97: #{tpu_custom_call.1} parent=92 // pred_fallthru
              _
            // Predicated region
            $region98: #{tpu_custom_call.1} parent=92 // pred_check
              _
            $region99: #{tpu_custom_call.1} parent=92 // pred_check_branch
              %373 = sbr.rel (0) target = $region101
            $region100: #{tpu_custom_call.1} parent=92 // pred_region
              loop: start=0, step=1, limit=1
              $region102: #{tpu_custom_call.1} parent=100 // loop_pre_header
                _
              $region103: #{tpu_custom_call.1} parent=100 // loop_header
                %s376 = sphi 0, %s380
                %p377 = scmp.ge.s32.totalorder %s376, 1
                %s381 = sphi %s367, %s367
                %s382 = sphi %s365, %s365
              $region104: #{tpu_custom_call.1} parent=100 // loop_header_branch
                %379 = sbr.rel (%p377) target = $region108
              $region105: #{tpu_custom_call.1} parent=100 // loop_body
                %v383 = vld [vmem:[%s381] sm:$0xf]
                %384 = vst [vmem:[%s382] sm:$0xf] %v383
                %v385 = vld [vmem:[%s381 + $0x10] sm:$0xf]
                %386 = vst [vmem:[%s382 + $0x4] sm:$0xf] %v385
                %v387 = vld [vmem:[%s381 + $0x20] sm:$0xf]
                %388 = vst [vmem:[%s382 + $0x8] sm:$0xf] %v387
                %v389 = vld [vmem:[%s381 + $0x30] sm:$0xf]
                %390 = vst [vmem:[%s382 + $0xc] sm:$0xf] %v389
              $region106: #{tpu_custom_call.1} parent=100 // loop_footer
                %s380 = sadd.s32 1, %s376
              $region107: #{tpu_custom_call.1} parent=100 // loop_footer_branch
                %375 = sbr.rel target = $region103
              $region108: #{tpu_custom_call.1} parent=100 // loop_exit
                _
            $region101: #{tpu_custom_call.1} parent=92 // pred_fallthru
              _
          $region93: #{tpu_custom_call.1} parent=88 // pred_fallthru
            _
          %418 = vnop
        $region89: #{tpu_custom_call.1} parent=43 // pred_fallthru
          _
      $region44: #{tpu_custom_call.1} parent=5 // pred_fallthru
        _
      %p419 = scmp.le.s32.totalorder 1, %s16
      %p420 = scmp.lt.s32.totalorder %s16, 5
      %p421 = pnand %p419, %p420
      %p422 = pneg %p421
      // Predicated region
      $region127: #{tpu_custom_call.1} parent=5 // pred_check
        _
      $region128: #{tpu_custom_call.1} parent=5 // pred_check_branch
        %424 = sbr.rel (%p421) target = $region130
      $region129: #{tpu_custom_call.1} parent=5 // pred_region
        %s425 = ssub.s32 %s16, 1
        %s426 = sand.u32 %s43, 1
        %s427 = sand.u32 %s43, 1
        %s428 = smul.addr %s427, 8
        %s429 = scalar_lea.vmem [#allocation2], %s428
        // Predicated region
        $region131: #{tpu_custom_call.1} parent=129 // pred_check
          %p430 = pneg %p56
        $region132: #{tpu_custom_call.1} parent=129 // pred_check_branch
          %432 = sbr.rel (%p430) target = $region134
        $region133: #{tpu_custom_call.1} parent=129 // pred_region
          _
        $region134: #{tpu_custom_call.1} parent=129 // pred_fallthru
          _
        %s433 = sand.u32 %s179, 1
        %s434 = sand.u32 %s179, 1
        %s435 = smul.addr %s434, 16
        %s436 = scalar_lea.vmem [#allocation3], %s435
        // Predicated region
        $region135: #{tpu_custom_call.1} parent=129 // pred_check
          %p437 = pneg %p192
        $region136: #{tpu_custom_call.1} parent=129 // pred_check_branch
          %439 = sbr.rel (%p437) target = $region138
        $region137: #{tpu_custom_call.1} parent=129 // pred_region
          _
        $region138: #{tpu_custom_call.1} parent=129 // pred_fallthru
          _
        %s440 = sand.u32 %s43, 1
        %s441 = sand.u32 %s43, 1
        %s442 = smul.addr %s441, 8
        %s443 = scalar_lea.vmem [#allocation2], %s442
        %p444 = pneg %p56
        %p445 = pneg %p53
        %p446 = scmp.lt.s32.totalorder %s25, 0
        %s447 = scalar_select %p446, %s25, 0
        %s448 = smul.addr %s447, 2
        %s449 = scalar_lea.vmem %s1, %s448
        %p450 = pneg %p82
        %p451 = pneg %p79
        %p452 = pneg %p103
        %p453 = pneg %p100
        %p454 = pneg %p124
        %p455 = pneg %p121
        %p456 = pneg %p145
        %p457 = pneg %p142
        %p458 = pneg %p166
        %p459 = pneg %p163
        %s460 = sand.u32 %s179, 1
        %s461 = sand.u32 %s179, 1
        %s462 = smul.addr %s461, 16
        %s463 = scalar_lea.vmem [#allocation3], %s462
        %p464 = pneg %p192
        %p465 = pneg %p189
        %p466 = pneg %p213
        %p467 = pneg %p210
        %p468 = pneg %p234
        %p469 = pneg %p231
        %p470 = pneg %p260
        %p471 = pneg %p257
        %s472 = smul.u32 2, %s25
        %p473 = scmp.lt.s32.totalorder %s25, 0
        %s474 = scalar_select %p473, %s25, 0
        %s475 = smul.addr %s474, 2
        %s476 = scalar_lea.vmem %s1, %s475
        %p478 = scmp.eq.s32.totalorder %s26, 0
        // Predicated region
        $region139: #{tpu_custom_call.1} parent=129 // pred_check
          %p479 = pneg %p478
        $region140: #{tpu_custom_call.1} parent=129 // pred_check_branch
          %481 = sbr.rel (%p479) target = $region142
        $region141: #{tpu_custom_call.1} parent=129 // pred_region
          %v482 = vld [vmem:[%s476] sm:$0x3]
          %v483 = vld [vmem:[%s2] sm:$0xff]
          %v484 = vld [vmem:[%s2 + $0x8] sm:$0xff]
          %v485 = vld [vmem:[%s2 + $0x10] sm:$0xff]
          %v486 = vld [vmem:[%s2 + $0x18] sm:$0xff]
          %v487 = vld [vmem:[%s2 + $0x20] sm:$0xff]
          %v488 = vld [vmem:[%s2 + $0x28] sm:$0xff]
          %v489 = vld [vmem:[%s3] sm:$0x1]
          %v491 = vlaneseq
          %v492 = vshrl.u32 %v491, 7
          %v493 = vsub.s32 0, %v492
          %v494 = vrot.slane %v489, %v493
          %vm496 = vcmask 392192
          %v498 = vsel %vm496, %v482, 0
          %500 = vmatprep.subr.mxu0 0.0
          %501 = vmatpush1.msra.mxu0 %v483
          %502 = vmatprep.subr.mxu0 0.0
          %503 = vmatpush1.msra.mxu0 %v484
          %504 = vmatprep.subr.mxu0 0.0
          %505 = vmatpush1.msra.mxu0 %v485
          %506 = vmatprep.subr.mxu0 0.0
          %507 = vmatpush1.msra.mxu0 %v486
          %508 = vmatprep.subr.mxu0 0.0
          %509 = vmatpush1.msra.mxu0 %v487
          %510 = vmatprep.subr.mxu0 0.0
          %511 = vmatpush1.msra.mxu0 %v488
          %512 = vmatprep.subr.mxu0 0.0
          %513 = vmatpush1.msra.mxu0 0.0
          %514 = vmatprep.subr.mxu0 0.0
          %515 = vmatpush1.msra.mxu0 0.0
          %516 = vmatprep.subr.mxu0 0.0
          %517 = vmatpush1.msra.mxu0 0.0
          %518 = vmatprep.subr.mxu0 0.0
          %519 = vmatpush1.msra.mxu0 0.0
          %520 = vmatprep.subr.mxu0 0.0
          %521 = vmatpush1.msra.mxu0 0.0
          %522 = vmatprep.subr.mxu0 0.0
          %523 = vmatpush1.msra.mxu0 0.0
          %524 = vmatprep.subr.mxu0 0.0
          %525 = vmatpush1.msra.mxu0 0.0
          %526 = vmatprep.subr.mxu0 0.0
          %527 = vmatpush1.msra.mxu0 0.0
          %528 = vmatprep.subr.mxu0 0.0
          %529 = vmatpush1.msra.mxu0 0.0
          %530 = vmatprep.subr.mxu0 0.0
          %531 = vmatpush1.msra.mxu0 0.0
          %532 = vmatprep.subr.mxu0 0.0
          %533 = vmatpush1.msra.mxu0 0.0
          %534 = vmatprep.subr.mxu0 0.0
          %535 = vmatpush1.msra.mxu0 0.0
          %536 = vmatprep.subr.mxu0 0.0
          %537 = vmatpush1.msra.mxu0 0.0
          %538 = vmatprep.subr.mxu0 0.0
          %539 = vmatpush1.msra.mxu0 0.0
          %540 = vmatprep.subr.mxu0 0.0
          %541 = vmatpush1.msra.mxu0 0.0
          %542 = vmatprep.subr.mxu0 0.0
          %543 = vmatpush1.msra.mxu0 0.0
          %544 = vmatprep.subr.mxu0 0.0
          %545 = vmatpush1.msra.mxu0 0.0
          %546 = vmatprep.subr.mxu0 0.0
          %547 = vmatpush1.msra.mxu0 0.0
          %548 = vmatprep.subr.mxu0 0.0
          %549 = vmatpush1.msra.mxu0 0.0
          %550 = vmatprep.subr.mxu0 0.0
          %551 = vmatpush1.msra.mxu0 0.0
          %552 = vmatprep.subr.mxu0 0.0
          %553 = vmatpush1.msra.mxu0 0.0
          %554 = vmatprep.subr.mxu0 0.0
          %555 = vmatpush1.msra.mxu0 0.0
          %556 = vmatprep.subr.mxu0 0.0
          %557 = vmatpush1.msra.mxu0 0.0
          %558 = vmatprep.subr.mxu0 0.0
          %559 = vmatpush1.msra.mxu0 0.0
          %560 = vmatprep.subr.mxu0 0.0
          %561 = vmatpush1.msra.mxu0 0.0
          %562 = vmatprep.subr.mxu0 0.0
          %563 = vmatpush1.msra.mxu0 0.0
          %564 = vmatprep.mubr.f32.mxu0 0.0
          %565 = vmatmul.mubr.f32.gmra.mrb[0].mxu0 %v498
          %v566 = vpop.f32.mrb[0].mxu0
          %v567 = vadd.f32 %v494, %v566
          %v568 = vpop.f32.mrb[0].mxu0
          %569 = vdwg.mxu0
          %v570 = vld [vmem:[%s4] sm:$0xf]
          %v571 = vld [vmem:[%s4 + $0x4] sm:$0xf]
          %v572 = vld [vmem:[%s4 + $0x8] sm:$0xf]
          %v573 = vunpack.c.l.bf16 %v570
          %v574 = vunpack.c.l.bf16 %v571
          %v575 = vunpack.c.l.bf16 %v572
          %v576 = vld [vmem:[%s5] sm:$0x1]
          %v578 = vlaneseq
          %v579 = vshrl.u32 %v578, 7
          %v580 = vsub.s32 0, %v579
          %v581 = vrot.slane %v576, %v580
          %vm583 = vcmask 195584
          %v585 = vsel %vm583, %v567, 0
          %587 = vmatprep.subr.mxu0 0.0
          %588 = vmatpush1.msra.mxu0 %v573
          %589 = vmatprep.subr.mxu0 0.0
          %590 = vmatpush1.msra.mxu0 %v574
          %591 = vmatprep.subr.mxu0 0.0
          %592 = vmatpush1.msra.mxu0 %v575
          %593 = vmatprep.subr.mxu0 0.0
          %594 = vmatpush1.msra.mxu0 0.0
          %595 = vmatprep.subr.mxu0 0.0
          %596 = vmatpush1.msra.mxu0 0.0
          %597 = vmatprep.subr.mxu0 0.0
          %598 = vmatpush1.msra.mxu0 0.0
          %599 = vmatprep.subr.mxu0 0.0
          %600 = vmatpush1.msra.mxu0 0.0
          %601 = vmatprep.subr.mxu0 0.0
          %602 = vmatpush1.msra.mxu0 0.0
          %603 = vmatprep.subr.mxu0 0.0
          %604 = vmatpush1.msra.mxu0 0.0
          %605 = vmatprep.subr.mxu0 0.0
          %606 = vmatpush1.msra.mxu0 0.0
          %607 = vmatprep.subr.mxu0 0.0
          %608 = vmatpush1.msra.mxu0 0.0
          %609 = vmatprep.subr.mxu0 0.0
          %610 = vmatpush1.msra.mxu0 0.0
          %611 = vmatprep.subr.mxu0 0.0
          %612 = vmatpush1.msra.mxu0 0.0
          %613 = vmatprep.subr.mxu0 0.0
          %614 = vmatpush1.msra.mxu0 0.0
          %615 = vmatprep.subr.mxu0 0.0
          %616 = vmatpush1.msra.mxu0 0.0
          %617 = vmatprep.subr.mxu0 0.0
          %618 = vmatpush1.msra.mxu0 0.0
          %619 = vmatprep.subr.mxu0 0.0
          %620 = vmatpush1.msra.mxu0 0.0
          %621 = vmatprep.subr.mxu0 0.0
          %622 = vmatpush1.msra.mxu0 0.0
          %623 = vmatprep.subr.mxu0 0.0
          %624 = vmatpush1.msra.mxu0 0.0
          %625 = vmatprep.subr.mxu0 0.0
          %626 = vmatpush1.msra.mxu0 0.0
          %627 = vmatprep.subr.mxu0 0.0
          %628 = vmatpush1.msra.mxu0 0.0
          %629 = vmatprep.subr.mxu0 0.0
          %630 = vmatpush1.msra.mxu0 0.0
          %631 = vmatprep.subr.mxu0 0.0
          %632 = vmatpush1.msra.mxu0 0.0
          %633 = vmatprep.subr.mxu0 0.0
          %634 = vmatpush1.msra.mxu0 0.0
          %635 = vmatprep.subr.mxu0 0.0
          %636 = vmatpush1.msra.mxu0 0.0
          %637 = vmatprep.subr.mxu0 0.0
          %638 = vmatpush1.msra.mxu0 0.0
          %639 = vmatprep.subr.mxu0 0.0
          %640 = vmatpush1.msra.mxu0 0.0
          %641 = vmatprep.subr.mxu0 0.0
          %642 = vmatpush1.msra.mxu0 0.0
          %643 = vmatprep.subr.mxu0 0.0
          %644 = vmatpush1.msra.mxu0 0.0
          %645 = vmatprep.subr.mxu0 0.0
          %646 = vmatpush1.msra.mxu0 0.0
          %647 = vmatprep.subr.mxu0 0.0
          %648 = vmatpush1.msra.mxu0 0.0
          %649 = vmatprep.subr.mxu0 0.0
          %650 = vmatpush1.msra.mxu0 0.0
          %651 = vmatprep.mubr.f32.mxu0 0.0
          %652 = vmatmul.mubr.f32.gmra.mrb[0].mxu0 %v585
          %v653 = vpop.f32.mrb[0].mxu0
          %v654 = vadd.f32 %v581, %v653
          %v655 = vpop.f32.mrb[0].mxu0
          %656 = vdwg.mxu0
          %v657 = vmax.f32 %v654, 0.0
          %v658 = vld [vmem:[%s7] sm:$0xff]
          %v659 = vld [vmem:[%s7 + $0x8] sm:$0xff]
          %v660 = vld [vmem:[%s8] sm:$0x1]
          %v662 = vlaneseq
          %v663 = vshrl.u32 %v662, 7
          %v664 = vsub.s32 0, %v663
          %v665 = vrot.slane %v660, %v664
          %vm667 = vcmask 130048
          %v669 = vsel %vm667, %v657, 0
          %671 = vmatprep.subr.mxu0 0.0
          %672 = vmatpush1.msra.mxu0 %v658
          %673 = vmatprep.subr.mxu0 0.0
          %674 = vmatpush1.msra.mxu0 %v659
          %675 = vmatprep.subr.mxu0 0.0
          %676 = vmatpush1.msra.mxu0 0.0
          %677 = vmatprep.subr.mxu0 0.0
          %678 = vmatpush1.msra.mxu0 0.0
          %679 = vmatprep.subr.mxu0 0.0
          %680 = vmatpush1.msra.mxu0 0.0
          %681 = vmatprep.subr.mxu0 0.0
          %682 = vmatpush1.msra.mxu0 0.0
          %683 = vmatprep.subr.mxu0 0.0
          %684 = vmatpush1.msra.mxu0 0.0
          %685 = vmatprep.subr.mxu0 0.0
          %686 = vmatpush1.msra.mxu0 0.0
          %687 = vmatprep.subr.mxu0 0.0
          %688 = vmatpush1.msra.mxu0 0.0
          %689 = vmatprep.subr.mxu0 0.0
          %690 = vmatpush1.msra.mxu0 0.0
          %691 = vmatprep.subr.mxu0 0.0
          %692 = vmatpush1.msra.mxu0 0.0
          %693 = vmatprep.subr.mxu0 0.0
          %694 = vmatpush1.msra.mxu0 0.0
          %695 = vmatprep.subr.mxu0 0.0
          %696 = vmatpush1.msra.mxu0 0.0
          %697 = vmatprep.subr.mxu0 0.0
          %698 = vmatpush1.msra.mxu0 0.0
          %699 = vmatprep.subr.mxu0 0.0
          %700 = vmatpush1.msra.mxu0 0.0
          %701 = vmatprep.subr.mxu0 0.0
          %702 = vmatpush1.msra.mxu0 0.0
          %703 = vmatprep.subr.mxu0 0.0
          %704 = vmatpush1.msra.mxu0 0.0
          %705 = vmatprep.subr.mxu0 0.0
          %706 = vmatpush1.msra.mxu0 0.0
          %707 = vmatprep.subr.mxu0 0.0
          %708 = vmatpush1.msra.mxu0 0.0
          %709 = vmatprep.subr.mxu0 0.0
          %710 = vmatpush1.msra.mxu0 0.0
          %711 = vmatprep.subr.mxu0 0.0
          %712 = vmatpush1.msra.mxu0 0.0
          %713 = vmatprep.subr.mxu0 0.0
          %714 = vmatpush1.msra.mxu0 0.0
          %715 = vmatprep.subr.mxu0 0.0
          %716 = vmatpush1.msra.mxu0 0.0
          %717 = vmatprep.subr.mxu0 0.0
          %718 = vmatpush1.msra.mxu0 0.0
          %719 = vmatprep.subr.mxu0 0.0
          %720 = vmatpush1.msra.mxu0 0.0
          %721 = vmatprep.subr.mxu0 0.0
          %722 = vmatpush1.msra.mxu0 0.0
          %723 = vmatprep.subr.mxu0 0.0
          %724 = vmatpush1.msra.mxu0 0.0
          %725 = vmatprep.subr.mxu0 0.0
          %726 = vmatpush1.msra.mxu0 0.0
          %727 = vmatprep.subr.mxu0 0.0
          %728 = vmatpush1.msra.mxu0 0.0
          %729 = vmatprep.subr.mxu0 0.0
          %730 = vmatpush1.msra.mxu0 0.0
          %731 = vmatprep.subr.mxu0 0.0
          %732 = vmatpush1.msra.mxu0 0.0
          %733 = vmatprep.subr.mxu0 0.0
          %734 = vmatpush1.msra.mxu0 0.0
          %735 = vmatprep.mubr.f32.mxu0 0.0
          %736 = vmatmul.mubr.f32.gmra.mrb[0].mxu0 %v669
          %v737 = vpop.f32.mrb[0].mxu0
          %v738 = vadd.f32 %v665, %v737
          %v739 = vpop.f32.mrb[0].mxu0
          %740 = vdwg.mxu0
          %vm741 = vcmask 25600
          %742 = vst.msk [vmem:[#allocation4] sm:$0x3] %vm741, %v738
        $region142: #{tpu_custom_call.1} parent=129 // pred_fallthru
          _
        %v743 = vld [vmem:[%s429] sm:$0xf]
        %v744 = vld [vmem:[%s429 + $0x4] sm:$0xf]
        %v745 = vld [vmem:[%s4] sm:$0xf]
        %v746 = vld [vmem:[%s4 + $0x4] sm:$0xf]
        %v747 = vld [vmem:[%s4 + $0x8] sm:$0xf]
        %v748 = vld [vmem:[%s5] sm:$0x1]
        %v750 = vlaneseq
        %v751 = vshrl.u32 %v750, 7
        %v752 = vsub.s32 0, %v751
        %v753 = vrot.slane %v748, %v752
        %v757 = vunpack.c.l.b16 %v743
        %v758 = vunpack.c.l.b16 %v744
        %v759 = vpack.c.b16 %v758, %v757
        %v763 = vunpack.c.l.b16 %v745
        %v764 = vunpack.c.l.b16 %v746
        %v765 = vunpack.c.l.b16 %v747
        %v766 = vpack.c.b16 %v764, %v763
        %v767 = vpack.c.b16 %v765, %v765
        %vm769 = vcmask 195584
        %v771 = vsel %vm769, %v759, 0
        %vm773 = vcmask 1043456
        %v775 = vsel %vm773, %v767, 0
        %777 = vmatprep.subr.bf16.mxu0 0
        %778 = vmatpush1.bf16.msra.mxu0 %v766
        %779 = vmatprep.subr.bf16.mxu0 0
        %780 = vmatpush1.bf16.msra.mxu0 %v775
        %781 = vmatprep.subr.bf16.mxu0 0
        %782 = vmatpush1.bf16.msra.mxu0 0
        %783 = vmatprep.subr.bf16.mxu0 0
        %784 = vmatpush1.bf16.msra.mxu0 0
        %785 = vmatprep.subr.bf16.mxu0 0
        %786 = vmatpush1.bf16.msra.mxu0 0
        %787 = vmatprep.subr.bf16.mxu0 0
        %788 = vmatpush1.bf16.msra.mxu0 0
        %789 = vmatprep.subr.bf16.mxu0 0
        %790 = vmatpush1.bf16.msra.mxu0 0
        %791 = vmatprep.subr.bf16.mxu0 0
        %792 = vmatpush1.bf16.msra.mxu0 0
        %793 = vmatprep.subr.bf16.mxu0 0
        %794 = vmatpush1.bf16.msra.mxu0 0
        %795 = vmatprep.subr.bf16.mxu0 0
        %796 = vmatpush1.bf16.msra.mxu0 0
        %797 = vmatprep.subr.bf16.mxu0 0
        %798 = vmatpush1.bf16.msra.mxu0 0
        %799 = vmatprep.subr.bf16.mxu0 0
        %800 = vmatpush1.bf16.msra.mxu0 0
        %801 = vmatprep.subr.bf16.mxu0 0
        %802 = vmatpush1.bf16.msra.mxu0 0
        %803 = vmatprep.subr.bf16.mxu0 0
        %804 = vmatpush1.bf16.msra.mxu0 0
        %805 = vmatprep.subr.bf16.mxu0 0
        %806 = vmatpush1.bf16.msra.mxu0 0
        %807 = vmatprep.subr.bf16.mxu0 0
        %808 = vmatpush1.bf16.msra.mxu0 0
        %809 = vmatprep.mubr.bf16.mxu0 0
        %810 = vmatmul.mubr.bf16.gmra.mrb[0].mxu0 %v771
        %v811 = vpop.f32.mrb[0].mxu0
        %v812 = vadd.f32 %v753, %v811
        %v813 = vpop.f32.mrb[0].mxu0
        %v814 = vpop.f32.mrb[0].mxu0
        %v815 = vadd.f32 %v753, %v814
        %v816 = vpop.f32.mrb[0].mxu0
        %817 = vdwg.mxu0
        %v818 = vmax.f32 %v812, 0.0
        %v819 = vmax.f32 %v815, 0.0
        %v820 = vld [vmem:[%s436] sm:$0xf]
        %v821 = vunpack.c.l.bf16 %v820
        %v822 = vmul.f32 %v818, %v821
        %v823 = vmul.f32 %v819, %v821
        %vm824 = vcmask 130048
        %v825 = vsel %vm824, %v822, 0.0
        %v826 = vrot.slane %v825, 4
        %v827 = vadd.f32 %v825, %v826
        %v828 = vrot.slane %v827, 2
        %v829 = vadd.f32 %v827, %v828
        %v830 = vrot.slane %v829, 1
        %v831 = vadd.f32 %v829, %v830
        %v832 = vsel %vm824, %v823, 0.0
        %v833 = vrot.slane %v832, 4
        %v834 = vadd.f32 %v832, %v833
        %v835 = vrot.slane %v834, 2
        %v836 = vadd.f32 %v834, %v835
        %v837 = vrot.slane %v836, 1
        %v838 = vadd.f32 %v836, %v837
        %vm841 = vcmask 1041409
        %v842 = vsel %vm841, %v838, %v831
        %vm844 = vcmask 123904
        %v845 = vsel %vm844, %v842, 0.0
        %846 = vadd.xlane.f32.xlu0 %v845
        %v847 = vpop.xlane.xlu0 %846
        %s848 = scalar_lea.vmem %s436, 4 [#allocation3]
        %v849 = vld [vmem:[%s848] sm:$0xf]
        %v850 = vunpack.c.l.bf16 %v849
        %v851 = vmul.f32 %v818, %v850
        %v852 = vmul.f32 %v819, %v850
        %v853 = vsel %vm824, %v851, 0.0
        %v854 = vrot.slane %v853, 4
        %v855 = vadd.f32 %v853, %v854
        %v856 = vrot.slane %v855, 2
        %v857 = vadd.f32 %v855, %v856
        %v858 = vrot.slane %v857, 1
        %v859 = vadd.f32 %v857, %v858
        %v860 = vsel %vm824, %v852, 0.0
        %v861 = vrot.slane %v860, 4
        %v862 = vadd.f32 %v860, %v861
        %v863 = vrot.slane %v862, 2
        %v864 = vadd.f32 %v862, %v863
        %v865 = vrot.slane %v864, 1
        %v866 = vadd.f32 %v864, %v865
        %v869 = vsel %vm841, %v866, %v859
        %v871 = vsel %vm844, %v869, 0.0
        %872 = vadd.xlane.f32.xlu0 %v871
        %v873 = vpop.xlane.xlu0 %872
        %s874 = scalar_lea.vmem %s436, 8 [#allocation3]
        %v875 = vld [vmem:[%s874] sm:$0xf]
        %v876 = vunpack.c.l.bf16 %v875
        %v877 = vmul.f32 %v818, %v876
        %v878 = vmul.f32 %v819, %v876
        %v879 = vsel %vm824, %v877, 0.0
        %v880 = vrot.slane %v879, 4
        %v881 = vadd.f32 %v879, %v880
        %v882 = vrot.slane %v881, 2
        %v883 = vadd.f32 %v881, %v882
        %v884 = vrot.slane %v883, 1
        %v885 = vadd.f32 %v883, %v884
        %v886 = vsel %vm824, %v878, 0.0
        %v887 = vrot.slane %v886, 4
        %v888 = vadd.f32 %v886, %v887
        %v889 = vrot.slane %v888, 2
        %v890 = vadd.f32 %v888, %v889
        %v891 = vrot.slane %v890, 1
        %v892 = vadd.f32 %v890, %v891
        %v895 = vsel %vm841, %v892, %v885
        %v897 = vsel %vm844, %v895, 0.0
        %898 = vadd.xlane.f32.xlu0 %v897
        %v899 = vpop.xlane.xlu0 %898
        %s900 = scalar_lea.vmem %s436, 12 [#allocation3]
        %v901 = vld [vmem:[%s900] sm:$0xf]
        %v902 = vunpack.c.l.bf16 %v901
        %v903 = vmul.f32 %v818, %v902
        %v904 = vmul.f32 %v819, %v902
        %v905 = vsel %vm824, %v903, 0.0
        %v906 = vrot.slane %v905, 4
        %v907 = vadd.f32 %v905, %v906
        %v908 = vrot.slane %v907, 2
        %v909 = vadd.f32 %v907, %v908
        %v910 = vrot.slane %v909, 1
        %v911 = vadd.f32 %v909, %v910
        %v912 = vsel %vm824, %v904, 0.0
        %v913 = vrot.slane %v912, 4
        %v914 = vadd.f32 %v912, %v913
        %v915 = vrot.slane %v914, 2
        %v916 = vadd.f32 %v914, %v915
        %v917 = vrot.slane %v916, 1
        %v918 = vadd.f32 %v916, %v917
        %v921 = vsel %vm841, %v918, %v911
        %v923 = vsel %vm844, %v921, 0.0
        %924 = vadd.xlane.f32.xlu0 %v923
        %v925 = vpop.xlane.xlu0 %924
        %vm926 = vcmask 7168
        %v927 = vsel %vm926, %v847, %v873
        %vm928 = vcmask 15360
        %v929 = vsel %vm928, %v927, %v899
        %vm930 = vcmask 23552
        %v931 = vsel %vm930, %v929, %v925
        %v932 = vld [vmem:[#allocation4] sm:$0x3]
        %v933 = vadd.f32 %v932, %v931
        %vm934 = vcmask 25600
        %935 = vst.msk [vmem:[#allocation4] sm:$0x3] %vm934, %v933
        // Predicated region
        $region143: #{tpu_custom_call.1} parent=129 // pred_check
          %p936 = pneg %p257
        $region144: #{tpu_custom_call.1} parent=129 // pred_check_branch
          %938 = sbr.rel (%p936) target = $region146
        $region145: #{tpu_custom_call.1} parent=129 // pred_region
          %s940 = ssub.s32 32, 32
          %941 = vsyncadd [#allocation5], %s940
          %s942 = smul.addr %s25, 32
          %s943 = scalar_lea.hbm %s9, %s942
          %s945 = sshll.u32 [#allocation4], 4
          %s946 = int_to_ptr.vmem [resolvable:$true] %s945
          %948 = dma.vmem_to_hbm [thread:$0]  %s946, 32, %s943, [#allocation5]
        $region146: #{tpu_custom_call.1} parent=129 // pred_fallthru
          _
        // Predicated region
        $region147: #{tpu_custom_call.1} parent=129 // pred_check
          %p949 = pneg %p257
        $region148: #{tpu_custom_call.1} parent=129 // pred_check_branch
          %951 = sbr.rel (%p949) target = $region150
        $region149: #{tpu_custom_call.1} parent=129 // pred_region
          %952 = dma.done [#allocation5], 32
        $region150: #{tpu_custom_call.1} parent=129 // pred_fallthru
          _
      $region130: #{tpu_custom_call.1} parent=5 // pred_fallthru
        _
      %p953 = scmp.le.s32.totalorder 2, %s16
      // Predicated region
      $region151: #{tpu_custom_call.1} parent=5 // pred_check
        %p954 = pneg %p953
      $region152: #{tpu_custom_call.1} parent=5 // pred_check_branch
        %956 = sbr.rel (%p954) target = $region154
      $region153: #{tpu_custom_call.1} parent=5 // pred_region
        %s957 = ssub.s32 %s16, 2
      $region154: #{tpu_custom_call.1} parent=5 // pred_fallthru
        _
    $region6: #{tpu_custom_call.1} parent=1 // loop_footer
      %s20 = sadd.s32 1, %s16
    $region7: #{tpu_custom_call.1} parent=1 // loop_footer_branch
      %15 = sbr.rel target = $region3
    $region8: #{tpu_custom_call.1} parent=1 // loop_exit
      _
    %958 = vsyncpa [#allocation5], 1
    %s959 = scalar_lea.sflag [#allocation5], 1
    %960 = vsyncpa %s959, 1

</llo_original>
